<compile_context>
chip_gen: v7x
topology: tpu7x:2x2x1
jax: 0.10.0
libtpu: 0.0.40
codegen_flags: <defaults>
</compile_context>

<pallas_src>
import functools
import numpy as np

import jax
import jax.numpy as jnp
from jax import lax
from jax.experimental import pallas as pl
from jax.experimental.pallas import tpu as pltpu


# ----------------------------------------------------------------------------
# Constant-matrix construction (trace time, numpy)
# ----------------------------------------------------------------------------
def _gaussian_1d(scale):
    """1-D normalized Gaussian taps + pad sizes, as AntiAliasInterpolation2d.__init__."""
    sigma = (1.0 / scale - 1.0) / 2.0
    ksize = 2 * round(sigma * 4) + 1
    ka = ksize // 2
    kb = ka - 1 if ksize % 2 == 0 else ka
    mean = (ksize - 1) / 2.0
    g = np.arange(ksize, dtype=np.float64)
    k1 = np.exp(-((g - mean) ** 2) / (2.0 * sigma ** 2))
    k1 = k1 / k1.sum()  # outer(k1, k1) == normalized 2-D kernel (separable)
    return k1, ksize, ka, kb


def _banded_matrices(scale, H, W):
    """Constant A (Ho,H), B (W,Wo) with A @ x @ B == pad + blur + nearest subsample.

    Nearest index uses floor(o / scale) clipped to H-1; exact for the usual
    FOMM scales (0.5, 0.25, ...), may differ from F.interpolate for scales
    where H*scale is not an integer.
    """
    k1, ksize, ka, _ = _gaussian_1d(scale)
    Ho = int(np.floor(H * scale))
    Wo = int(np.floor(W * scale))
    inv = 1.0 / scale

    A = np.zeros((Ho, H), dtype=np.float32)
    for o in range(Ho):
        c = min(int(np.floor(o * inv)), H - 1)
        for kh in range(ksize):
            i = c + kh - ka          # taps in the zero-pad region simply drop out
            if 0 <= i < H:
                A[o, i] += k1[kh]

    Bm = np.zeros((W, Wo), dtype=np.float32)
    for o in range(Wo):
        c = min(int(np.floor(o * inv)), W - 1)
        for kw in range(ksize):
            j = c + kw - ka
            if 0 <= j < W:
                Bm[j, o] += k1[kw]

    return A, Bm, Ho, Wo


# ----------------------------------------------------------------------------
# Pallas kernel (all scales fused; one HBM read of x per plane)
# ----------------------------------------------------------------------------
def _pyramid_kernel(*refs, n_scales):
    # refs = [A_0, B_0, A_1, B_1, ..., x_ref, out_0, out_1, ...]
    ab_refs = refs[: 2 * n_scales]
    x_ref = refs[2 * n_scales]
    out_refs = refs[2 * n_scales + 1:]

    tile, H, W = x_ref.shape
    # Single cast of the input block to bf16, shared by every scale.
    xb = x_ref[...].astype(jnp.bfloat16)                       # (tile, H, W)

    for s in range(n_scales):
        a = ab_refs[2 * s][...]                                # (Ho, H)  bf16
        b = ab_refs[2 * s + 1][...]                            # (W, Wo)  bf16
        Ho = a.shape[0]
        Wo = b.shape[1]

        # Column pass FIRST (lane-dense N = W), batched over the plane axis:
        #   (tile, Ho, H) x (tile, H, W) -> (tile, Ho, W), f32 accumulation.
        a_b = jnp.broadcast_to(a, (tile, Ho, H))
        t1 = lax.dot_general(
            a_b, xb,
            dimension_numbers=(((2,), (1,)), ((0,), (0,))),
            preferred_element_type=jnp.float32)                # (tile, Ho, W)

        # Row pass as ONE large-M 2-D matmul on the MXU.
        t1 = t1.reshape(tile * Ho, W).astype(jnp.bfloat16)
        out = jnp.dot(t1, b, preferred_element_type=jnp.float32)   # (tile*Ho, Wo)

        # Whole-block store (no per-plane masked partial stores).
        out_refs[s][...] = out.reshape(tile, Ho, Wo).astype(out_refs[s].dtype)


# ----------------------------------------------------------------------------
# Tiling plan (generation-aware)
# ----------------------------------------------------------------------------
def _plan_tiling(bc, h, w, out_hw, x_itemsize):
    xi = max(int(x_itemsize), 2)
    in_bytes = h * w * xi                                   # input block / plane
    out_bytes = sum(ho * wo for ho, wo in out_hw) * xi      # all outputs / plane
    # In-kernel transients per plane: bf16 copy of x, broadcast A, f32+bf16
    # intermediate of the widest scale.
    trans = h * w * 2
    if out_hw:
        trans += max(ho * (h * 2 + w * 6) for ho, wo in out_hw)
    per_plane = 2 * (in_bytes + out_bytes) + trans          # 2x: double-buffered blocks

    try:
        vmem_cap = int(pltpu.get_tpu_info().vmem_capacity_bytes)
    except Exception:
        vmem_cap = 64 * 1024 * 1024                         # conservative (v7x-sized)

    budget = max(6 * 1024 * 1024, vmem_cap // 3)
    cap = max(1, min(128, budget // max(per_plane, 1)))

    # Aim for >= ~4 grid steps so megacore / 2-TC parts get several iterations
    # each (hides the prologue DMA); prefer a tile that divides bc, otherwise
    # grid = cdiv handles the ragged tail (no padded HBM copy of the input).
    target = max(1, min(cap, pl.cdiv(bc, 4)))
    tile = target
    for d in range(target, max(1, (2 * target) // 3) - 1, -1):
        if bc % d == 0:
            tile = d
            break
    grid_steps = pl.cdiv(bc, tile)

    # Scoped-VMEM limit: only raise when the estimate exceeds the default
    # scoped budget, and always leave >= 16 MiB of physical headroom
    # (=> <= 48 MiB on a 64 MiB v7x part).
    ab_bytes = 2 * sum((ho * h + w * wo) for ho, wo in out_hw) * 2   # bf16, 2-buffered
    est = tile * per_plane + ab_bytes + (2 << 20)
    default_scoped = 16 * 1024 * 1024 if vmem_cap >= (128 << 20) else 32 * 1024 * 1024
    vmem_limit = None
    if est > default_scoped:
        vmem_limit = int(min(2 * est, vmem_cap - (16 << 20)))
    return tile, grid_steps, vmem_limit


# ----------------------------------------------------------------------------
# Wrapper: one fused pallas_call for all non-identity scales
# ----------------------------------------------------------------------------
def _fused_pyramid(x, scales):
    """Returns {float(scale): (B, C, Ho, Wo)} for every non-identity scale."""
    B, C, H, W = x.shape
    BC = B * C

    active, mats, out_hw = [], [], []
    results = {}
    for s in scales:
        fs = float(s)
        if fs == 1.0 or fs in active:
            continue
        A_np, B_np, Ho, Wo = _banded_matrices(fs, H, W)
        if Ho == 0 or Wo == 0:
            results[fs] = jnp.zeros((B, C, Ho, Wo), x.dtype)
            continue
        active.append(fs)
        mats.append((jnp.asarray(A_np, dtype=jnp.bfloat16),
                     jnp.asarray(B_np, dtype=jnp.bfloat16)))
        out_hw.append((Ho, Wo))

    if not active:
        return results

    tile, grid_steps, vmem_limit = _plan_tiling(
        BC, H, W, out_hw, jnp.dtype(x.dtype).itemsize)

    xf = x.reshape(BC, H, W)

    in_specs, flat_in = [], []
    for (a_m, b_m), (Ho, Wo) in zip(mats, out_hw):
        in_specs.append(pl.BlockSpec((Ho, H), lambda i: (0, 0)))   # resident across grid
        in_specs.append(pl.BlockSpec((W, Wo), lambda i: (0, 0)))
        flat_in += [a_m, b_m]
    in_specs.append(pl.BlockSpec((tile, H, W), lambda i: (i, 0, 0)))
    flat_in.append(xf)

    out_shape = tuple(jax.ShapeDtypeStruct((BC, Ho, Wo), x.dtype) for Ho, Wo in out_hw)
    out_specs = [pl.BlockSpec((tile, Ho, Wo), lambda i: (i, 0, 0)) for Ho, Wo in out_hw]

    cp_kwargs = dict(dimension_semantics=("parallel",))
    if vmem_limit is not None:
        cp_kwargs["vmem_limit_bytes"] = vmem_limit

    outs = pl.pallas_call(
        functools.partial(_pyramid_kernel, n_scales=len(active)),
        out_shape=out_shape,
        grid_spec=pltpu.PrefetchScalarGridSpec(
            num_scalar_prefetch=0,
            grid=(grid_steps,),
            in_specs=in_specs,
            out_specs=out_specs,
        ),
        compiler_params=pltpu.CompilerParams(**cp_kwargs),
    )(*flat_in)

    if not isinstance(outs, (tuple, list)):
        outs = (outs,)
    for fs, (Ho, Wo), o in zip(active, out_hw, outs):
        results[fs] = o.reshape(B, C, Ho, Wo)
    return results


def anti_alias_downsample(x, scale):
    """Equivalent of AntiAliasInterpolation2d(num_channels, scale)(x); x is NCHW."""
    if float(scale) == 1.0:
        return x
    return _fused_pyramid(x, (scale,))[float(scale)]


class ImagePyramide:
    """JAX/Pallas equivalent of the PyTorch ImagePyramide module (forward pass)."""

    def __init__(self, scales, num_channels):
        self.scales = list(scales)
        self.num_channels = num_channels  # blur kernel is identical for every channel

    def __call__(self, x):
        fused = _fused_pyramid(x, self.scales)   # single pallas_call, x read once
        out_dict = {}
        for scale in self.scales:
            fs = float(scale)
            # Matches 'prediction_' + str(scale).replace('-', '.')
            key = 'prediction_' + str(scale)
            out_dict[key] = x if fs == 1.0 else fused[fs]
        return out_dict


# ----------------------------------------------------------------------------
# Reference (numpy, float64) for the self-check
# ----------------------------------------------------------------------------
def _reference_downsample_np(x, scale):
    xn = np.asarray(x, dtype=np.float64)
    if scale == 1.0:
        return xn
    B, C, H, W = xn.shape
    k1, ksize, ka, kb = _gaussian_1d(scale)
    k2 = np.outer(k1, k1)
    xp = np.pad(xn, ((0, 0), (0, 0), (ka, kb), (ka, kb)))
    blur = np.zeros_like(xn)
    for kh in range(ksize):
        for kw in range(ksize):
            blur = blur + k2[kh, kw] * xp[:, :, kh:kh + H, kw:kw + W]
    Ho = int(np.floor(H * scale))
    Wo = int(np.floor(W * scale))
    inv = 1.0 / scale
    ridx = np.minimum(np.floor(np.arange(Ho) * inv).astype(np.int64), H - 1)
    cidx = np.minimum(np.floor(np.arange(Wo) * inv).astype(np.int64), W - 1)
    return blur[:, :, ridx][:, :, :, cidx]


if __name__ == "__main__":
    key = jax.random.PRNGKey(0)
    B, C, H, W = 2, 4, 16, 16
    x = jax.random.normal(key, (B, C, H, W), dtype=jnp.float32)

    scales = [1, 0.5, 0.25]
    pyramid = ImagePyramide(scales=scales, num_channels=C)
    out = pyramid(x)

    expected = {
        'prediction_1': (B, C, 16, 16),
        'prediction_0.5': (B, C, 8, 8),
        'prediction_0.25': (B, C, 4, 4),
    }
    for k, v in out.items():
        v = jax.block_until_ready(v)
        assert v.shape == expected[k], (k, v.shape, expected[k])
        assert v.dtype == x.dtype, (k, v.dtype, x.dtype)

    # Numerical check against a float64 numpy reference of pad+blur+nearest.
    # Tolerance covers bf16 MXU operands (normalized Gaussian, errors ~1e-2).
    xn = np.asarray(x)
    for scale in scales:
        key_name = 'prediction_' + str(scale)
        ref = _reference_downsample_np(xn, scale)
        got = np.asarray(out[key_name])
        np.testing.assert_allclose(got, ref, rtol=5e-2, atol=5e-2)

    print("KERNEL_OK")
</pallas_src>

<mosaic_0001>
module attributes {stable_mosaic.version = 11 : i64} {
  func.func @_pyramid_kernel(%arg0: i32, %arg1: memref<8x16xbf16, #tpu.memory_space<vmem>>, %arg2: memref<16x8xbf16, #tpu.memory_space<vmem>>, %arg3: memref<4x16xbf16, #tpu.memory_space<vmem>>, %arg4: memref<16x4xbf16, #tpu.memory_space<vmem>>, %arg5: memref<2x16x16xf32, #tpu.memory_space<vmem>>, %arg6: memref<2x8x8xf32, #tpu.memory_space<vmem>>, %arg7: memref<2x4x4xf32, #tpu.memory_space<vmem>>) attributes {dimension_semantics = [#tpu.dimension_semantics<parallel>], iteration_bounds = array<i64: 4>, scalar_prefetch = 0 : i64, scratch_operands = 0 : i64, tpu.core_type = #tpu.core_type<tc>, window_params = [{pipeline_mode = #tpu.pipeline_mode<synchronous>, transform_indices = @transform_0, window_bounds = array<i64: 8, 16>}, {pipeline_mode = #tpu.pipeline_mode<synchronous>, transform_indices = @transform_1, window_bounds = array<i64: 16, 8>}, {pipeline_mode = #tpu.pipeline_mode<synchronous>, transform_indices = @transform_2, window_bounds = array<i64: 4, 16>}, {pipeline_mode = #tpu.pipeline_mode<synchronous>, transform_indices = @transform_3, window_bounds = array<i64: 16, 4>}, {transform_indices = @transform_4, window_bounds = array<i64: 2, 16, 16>}, {transform_indices = @transform_5, window_bounds = array<i64: 2, 8, 8>}, {transform_indices = @transform_6, window_bounds = array<i64: 2, 4, 4>}]} {
    %c0 = arith.constant 0 : index
    %c0_0 = arith.constant 0 : index
    %c0_1 = arith.constant 0 : index
    %0 = vector.load %arg5[%c0, %c0_0, %c0_1] : memref<2x16x16xf32, #tpu.memory_space<vmem>>, vector<2x16x16xf32>
    %1 = arith.truncf %0 : vector<2x16x16xf32> to vector<2x16x16xbf16>
    %c0_2 = arith.constant 0 : index
    %c0_3 = arith.constant 0 : index
    %2 = vector.load %arg1[%c0_2, %c0_3] : memref<8x16xbf16, #tpu.memory_space<vmem>>, vector<8x16xbf16>
    %c0_4 = arith.constant 0 : index
    %c0_5 = arith.constant 0 : index
    %3 = vector.load %arg2[%c0_4, %c0_5] : memref<16x8xbf16, #tpu.memory_space<vmem>>, vector<16x8xbf16>
    %4 = vector.shape_cast %2 : vector<8x16xbf16> to vector<1x8x16xbf16>
    %5 = vector.broadcast %4 : vector<1x8x16xbf16> to vector<2x8x16xbf16>
    %cst = arith.constant dense<0.000000e+00> : vector<2x8x16xf32>
    %6 = tpu.matmul %5, %1, %cst {dimension_numbers = #tpu.dot_dimension_numbers<[2], [1], [1], [2], [0, 0, 0, 1, 1, 2], [0], [0]>} : vector<2x8x16xbf16>, vector<2x16x16xbf16>, vector<2x8x16xf32> -> vector<2x8x16xf32>
    %7 = vector.shape_cast %6 : vector<2x8x16xf32> to vector<16x16xf32>
    %8 = arith.truncf %7 : vector<16x16xf32> to vector<16x16xbf16>
    %cst_6 = arith.constant dense<0.000000e+00> : vector<16x8xf32>
    %9 = tpu.matmul %8, %3, %cst_6 {dimension_numbers = #tpu.dot_dimension_numbers<[1], [0], [0], [1], [0, 0, 1, 1], [], []>} : vector<16x16xbf16>, vector<16x8xbf16>, vector<16x8xf32> -> vector<16x8xf32>
    %10 = vector.shape_cast %9 : vector<16x8xf32> to vector<2x8x8xf32>
    %c0_7 = arith.constant 0 : index
    %c0_8 = arith.constant 0 : index
    %c0_9 = arith.constant 0 : index
    %11 = vector.load %arg6[%c0_7, %c0_8, %c0_9] : memref<2x8x8xf32, #tpu.memory_space<vmem>>, vector<2x8x8xf32>
    tpu.vector_store %arg6[%c0_7, %c0_8, %c0_9], %10 {strides = array<i32>} : memref<2x8x8xf32, #tpu.memory_space<vmem>>, vector<2x8x8xf32>,
    %c0_10 = arith.constant 0 : index
    %c0_11 = arith.constant 0 : index
    %12 = vector.load %arg3[%c0_10, %c0_11] : memref<4x16xbf16, #tpu.memory_space<vmem>>, vector<4x16xbf16>
    %c0_12 = arith.constant 0 : index
    %c0_13 = arith.constant 0 : index
    %13 = vector.load %arg4[%c0_12, %c0_13] : memref<16x4xbf16, #tpu.memory_space<vmem>>, vector<16x4xbf16>
    %14 = vector.shape_cast %12 : vector<4x16xbf16> to vector<1x4x16xbf16>
    %15 = vector.broadcast %14 : vector<1x4x16xbf16> to vector<2x4x16xbf16>
    %cst_14 = arith.constant dense<0.000000e+00> : vector<2x4x16xf32>
    %16 = tpu.matmul %15, %1, %cst_14 {dimension_numbers = #tpu.dot_dimension_numbers<[2], [1], [1], [2], [0, 0, 0, 1, 1, 2], [0], [0]>} : vector<2x4x16xbf16>, vector<2x16x16xbf16>, vector<2x4x16xf32> -> vector<2x4x16xf32>
    %17 = vector.shape_cast %16 : vector<2x4x16xf32> to vector<8x16xf32>
    %18 = arith.truncf %17 : vector<8x16xf32> to vector<8x16xbf16>
    %cst_15 = arith.constant dense<0.000000e+00> : vector<8x4xf32>
    %19 = tpu.matmul %18, %13, %cst_15 {dimension_numbers = #tpu.dot_dimension_numbers<[1], [0], [0], [1], [0, 0, 1, 1], [], []>} : vector<8x16xbf16>, vector<16x4xbf16>, vector<8x4xf32> -> vector<8x4xf32>
    %20 = vector.shape_cast %19 : vector<8x4xf32> to vector<2x4x4xf32>
    %c0_16 = arith.constant 0 : index
    %c0_17 = arith.constant 0 : index
    %c0_18 = arith.constant 0 : index
    %21 = vector.load %arg7[%c0_16, %c0_17, %c0_18] : memref<2x4x4xf32, #tpu.memory_space<vmem>>, vector<2x4x4xf32>
    tpu.vector_store %arg7[%c0_16, %c0_17, %c0_18], %20 {strides = array<i32>} : memref<2x4x4xf32, #tpu.memory_space<vmem>>, vector<2x4x4xf32>,
    return
  }
  func.func @transform_0(%arg0: i32) -> (i32, i32) {
    %c0_i32 = arith.constant 0 : i32
    %c0_i32_0 = arith.constant 0 : i32
    %c0_i32_1 = arith.constant 0 : i32
    return %c0_i32, %c0_i32_0 : i32, i32
  }
  func.func @transform_1(%arg0: i32) -> (i32, i32) {
    %c0_i32 = arith.constant 0 : i32
    %c0_i32_0 = arith.constant 0 : i32
    %c0_i32_1 = arith.constant 0 : i32
    return %c0_i32, %c0_i32_0 : i32, i32
  }
  func.func @transform_2(%arg0: i32) -> (i32, i32) {
    %c0_i32 = arith.constant 0 : i32
    %c0_i32_0 = arith.constant 0 : i32
    %c0_i32_1 = arith.constant 0 : i32
    return %c0_i32, %c0_i32_0 : i32, i32
  }
  func.func @transform_3(%arg0: i32) -> (i32, i32) {
    %c0_i32 = arith.constant 0 : i32
    %c0_i32_0 = arith.constant 0 : i32
    %c0_i32_1 = arith.constant 0 : i32
    return %c0_i32, %c0_i32_0 : i32, i32
  }
  func.func @transform_4(%arg0: i32) -> (i32, i32, i32) {
    %c0_i32 = arith.constant 0 : i32
    %c0_i32_0 = arith.constant 0 : i32
    %c0_i32_1 = arith.constant 0 : i32
    return %arg0, %c0_i32, %c0_i32_0 : i32, i32, i32
  }
  func.func @transform_5(%arg0: i32) -> (i32, i32, i32) {
    %c0_i32 = arith.constant 0 : i32
    %c0_i32_0 = arith.constant 0 : i32
    %c0_i32_1 = arith.constant 0 : i32
    return %arg0, %c0_i32, %c0_i32_0 : i32, i32, i32
  }
  func.func @transform_6(%arg0: i32) -> (i32, i32, i32) {
    %c0_i32 = arith.constant 0 : i32
    %c0_i32_0 = arith.constant 0 : i32
    %c0_i32_1 = arith.constant 0 : i32
    return %arg0, %c0_i32, %c0_i32_0 : i32, i32, i32
  }
}

</mosaic_0001>

<llo_original>
// kernel: tpu_custom_call.1
$region0: #{tpu_custom_call.1}
  #allocation0 [shape = 'u32[]', space=smem, size = 0x4, offset = 0x4, fixed_abs, tag = 'smem constant byte address 0x4 - core index']
  #allocation1 [shape = 'u32[144,128]{1,0:T(1,128)}', space=vmem, size = 0x12000, scoped, tag = 'internal scratch']
  %s0 = inlined_call_operand.vmem [shape: bf16[8,16], index: 0, kind: input, shape index: {}]
  %s1 = inlined_call_operand.vmem [shape: bf16[16,8], index: 1, kind: input, shape index: {}]
  %s2 = inlined_call_operand.vmem [shape: bf16[4,16], index: 2, kind: input, shape index: {}]
  %s3 = inlined_call_operand.vmem [shape: bf16[16,4], index: 3, kind: input, shape index: {}]
  %s4 = inlined_call_operand.hbm [shape: f32[8,16,16], index: 4, kind: input, shape index: {}]
  %s5 = inlined_call_operand.hbm [shape: f32[8,8,8], index: 5, kind: output, shape index: {0}]
  %s6 = inlined_call_operand.vmem [shape: f32[8,4,4], index: 6, kind: output, shape index: {1}]
  %7 = xla_tuple %s5, %s6
  %s8 = sld [smem:[#allocation0]]
  $region65: #{tpu_custom_call.1} parent=0
    _
  %s10 = ssub.s32 1, %s8
  %s11 = scalar_select 0, %s10, %s8
  $region1: #{tpu_custom_call.1} parent=0
    #allocation2 [shape = 'u8[32768]{0}', space=vmem, size = 0x8000, scoped, tag = 'input window, operand 4']
    #allocation3 [shape = 's32[2]{0}', space=sflag, size = 0x8, scoped, tag = 'scoped memory for tpu_custom_call.1']
    #allocation4 [shape = 's32[2]{0}', space=sflag, size = 0x8, scoped, tag = 'scoped memory for tpu_custom_call.1']
    #allocation5 [shape = 'u8[16384]{0}', space=vmem, size = 0x4000, scoped, tag = 'output window, operand 0']
    %12 = vsyncpa [#allocation3], 0
    %s13 = scalar_lea.sflag [#allocation3], 1
    %14 = vsyncpa %s13, 0
    %15 = vsyncpa [#allocation4], 0
    %s16 = scalar_lea.sflag [#allocation4], 1
    %17 = vsyncpa %s16, 0
    loop: start=0, step=1, limit=6
    $region2: #{tpu_custom_call.1} parent=1 // loop_pre_header
      _
    $region3: #{tpu_custom_call.1} parent=1 // loop_header
      %s19 = sphi 0, %s23
      %p20 = scmp.ge.s32.totalorder %s19, 6
      %s27 = sphi 0, %s27
      %s29 = sphi 0, %s27
      %s30 = sphi 0, %s29
      %s44 = sphi 0, %s30
      %s48 = sphi 0, %s48
      %s50 = sphi 0, %s48
      %s51 = sphi 0, %s50
      %s65 = sphi 0, %s51
      %s69 = sphi 0, %s69
      %s71 = sphi 0, %s69
      %s72 = sphi 0, %s71
      %s86 = sphi 0, %s72
      %s90 = sphi 0, %s90
      %s92 = sphi 0, %s90
      %s93 = sphi 0, %s92
      %s107 = sphi 0, %s93
      %s113 = sphi 0, %s115
      %s116 = sphi 0, %s113
      %s117 = sphi 0, %s116
      %s133 = sphi 0, %s117
      %s139 = sphi 0, %s141
      %s142 = sphi 0, %s139
      %s143 = sphi 0, %s142
      %s159 = sphi 0, %s143
      %s165 = sphi 0, %s167
      %s168 = sphi 0, %s165
      %s169 = sphi 0, %s168
      %s185 = sphi 0, %s169
    $region4: #{tpu_custom_call.1} parent=1 // loop_header_branch
      %22 = sbr.rel (%p20) target = $region8
    $region5: #{tpu_custom_call.1} parent=1 // loop_body
      %s24 = ssub.s32 %s19, 1
      %s25 = ssub.s32 %s19, 2
      %s26 = sadd.s32 %s19, 1
      %s28 = sadd.s32 %s27, 1
      %p31 = scmp.eq.s32.totalorder %s19, 3
      %p32 = scmp.ne.s32.totalorder %s27, %s29
      %p33 = scmp.eq.s32.totalorder %s19, 0
      %p34 = por %p32, %p33
      %p35 = scmp.ne.s32.totalorder %s27, %s29
      %p36 = scmp.eq.s32.totalorder %s24, 3
      %p37 = por %p35, %p36
      %p38 = scmp.ne.s32.totalorder %s29, %s30
      %p39 = scmp.eq.s32.totalorder %s24, 0
      %p40 = por %p38, %p39
      %p41 = scmp.ne.s32.totalorder %s29, %s30
      %p42 = scmp.eq.s32.totalorder %s25, 3
      %p43 = por %p41, %p42
      %p45 = scmp.ne.s32.totalorder %s30, %s44
      %p46 = scmp.eq.s32.totalorder %s25, 0
      %p47 = por %p45, %p46
      %s49 = sadd.s32 %s48, 1
      %p52 = scmp.eq.s32.totalorder %s19, 3
      %p53 = scmp.ne.s32.totalorder %s48, %s50
      %p54 = scmp.eq.s32.totalorder %s19, 0
      %p55 = por %p53, %p54
      %p56 = scmp.ne.s32.totalorder %s48, %s50
      %p57 = scmp.eq.s32.totalorder %s24, 3
      %p58 = por %p56, %p57
      %p59 = scmp.ne.s32.totalorder %s50, %s51
      %p60 = scmp.eq.s32.totalorder %s24, 0
      %p61 = por %p59, %p60
      %p62 = scmp.ne.s32.totalorder %s50, %s51
      %p63 = scmp.eq.s32.totalorder %s25, 3
      %p64 = por %p62, %p63
      %p66 = scmp.ne.s32.totalorder %s51, %s65
      %p67 = scmp.eq.s32.totalorder %s25, 0
      %p68 = por %p66, %p67
      %s70 = sadd.s32 %s69, 1
      %p73 = scmp.eq.s32.totalorder %s19, 3
      %p74 = scmp.ne.s32.totalorder %s69, %s71
      %p75 = scmp.eq.s32.totalorder %s19, 0
      %p76 = por %p74, %p75
      %p77 = scmp.ne.s32.totalorder %s69, %s71
      %p78 = scmp.eq.s32.totalorder %s24, 3
      %p79 = por %p77, %p78
      %p80 = scmp.ne.s32.totalorder %s71, %s72
      %p81 = scmp.eq.s32.totalorder %s24, 0
      %p82 = por %p80, %p81
      %p83 = scmp.ne.s32.totalorder %s71, %s72
      %p84 = scmp.eq.s32.totalorder %s25, 3
      %p85 = por %p83, %p84
      %p87 = scmp.ne.s32.totalorder %s72, %s86
      %p88 = scmp.eq.s32.totalorder %s25, 0
      %p89 = por %p87, %p88
      %s91 = sadd.s32 %s90, 1
      %p94 = scmp.eq.s32.totalorder %s19, 3
      %p95 = scmp.ne.s32.totalorder %s90, %s92
      %p96 = scmp.eq.s32.totalorder %s19, 0
      %p97 = por %p95, %p96
      %p98 = scmp.ne.s32.totalorder %s90, %s92
      %p99 = scmp.eq.s32.totalorder %s24, 3
      %p100 = por %p98, %p99
      %p101 = scmp.ne.s32.totalorder %s92, %s93
      %p102 = scmp.eq.s32.totalorder %s24, 0
      %p103 = por %p101, %p102
      %p104 = scmp.ne.s32.totalorder %s92, %s93
      %p105 = scmp.eq.s32.totalorder %s25, 3
      %p106 = por %p104, %p105
      %p108 = scmp.ne.s32.totalorder %s93, %s107
      %p109 = scmp.eq.s32.totalorder %s25, 0
      %p110 = por %p108, %p109
      %s111 = ssub.s32 %s19, %s26
      %p112 = scmp.eq.s32.totalorder %s111, 0
      %s114 = sadd.s32 %s113, 1
      %s115 = scalar_select %p112, %s113, %s114
      %p118 = pneg %p112
      %p119 = scmp.eq.s32.totalorder %s19, 3
      %p120 = por %p118, %p119
      %p121 = scmp.ne.s32.totalorder %s113, %s116
      %p122 = scmp.eq.s32.totalorder %s19, 0
      %p123 = por %p121, %p122
      %p124 = scmp.ne.s32.totalorder %s113, %s116
      %p125 = scmp.eq.s32.totalorder %s24, 3
      %p126 = por %p124, %p125
      %p127 = scmp.ne.s32.totalorder %s116, %s117
      %p128 = scmp.eq.s32.totalorder %s24, 0
      %p129 = por %p127, %p128
      %p130 = scmp.ne.s32.totalorder %s116, %s117
      %p131 = scmp.eq.s32.totalorder %s25, 3
      %p132 = por %p130, %p131
      %p134 = scmp.ne.s32.totalorder %s117, %s133
      %p135 = scmp.eq.s32.totalorder %s25, 0
      %p136 = por %p134, %p135
      %s137 = ssub.s32 %s19, %s26
      %p138 = scmp.eq.s32.totalorder %s137, 0
      %s140 = sadd.s32 %s139, 1
      %s141 = scalar_select %p138, %s139, %s140
      %p144 = pneg %p138
      %p145 = scmp.eq.s32.totalorder %s19, 3
      %p146 = por %p144, %p145
      %p147 = scmp.ne.s32.totalorder %s139, %s142
      %p148 = scmp.eq.s32.totalorder %s19, 0
      %p149 = por %p147, %p148
      %p150 = scmp.ne.s32.totalorder %s139, %s142
      %p151 = scmp.eq.s32.totalorder %s24, 3
      %p152 = por %p150, %p151
      %p153 = scmp.ne.s32.totalorder %s142, %s143
      %p154 = scmp.eq.s32.totalorder %s24, 0
      %p155 = por %p153, %p154
      %p156 = scmp.ne.s32.totalorder %s142, %s143
      %p157 = scmp.eq.s32.totalorder %s25, 3
      %p158 = por %p156, %p157
      %p160 = scmp.ne.s32.totalorder %s143, %s159
      %p161 = scmp.eq.s32.totalorder %s25, 0
      %p162 = por %p160, %p161
      %s163 = ssub.s32 %s19, %s26
      %p164 = scmp.eq.s32.totalorder %s163, 0
      %s166 = sadd.s32 %s165, 1
      %s167 = scalar_select %p164, %s165, %s166
      %p170 = pneg %p164
      %p171 = scmp.eq.s32.totalorder %s19, 3
      %p172 = por %p170, %p171
      %p173 = scmp.ne.s32.totalorder %s165, %s168
      %p174 = scmp.eq.s32.totalorder %s19, 0
      %p175 = por %p173, %p174
      %p176 = scmp.ne.s32.totalorder %s165, %s168
      %p177 = scmp.eq.s32.totalorder %s24, 3
      %p178 = por %p176, %p177
      %p179 = scmp.ne.s32.totalorder %s168, %s169
      %p180 = scmp.eq.s32.totalorder %s24, 0
      %p181 = por %p179, %p180
      %p182 = scmp.ne.s32.totalorder %s168, %s169
      %p183 = scmp.eq.s32.totalorder %s25, 3
      %p184 = por %p182, %p183
      %p186 = scmp.ne.s32.totalorder %s169, %s185
      %p187 = scmp.eq.s32.totalorder %s25, 0
      %p188 = por %p186, %p187
      %p189 = scmp.le.s32.totalorder 1, %s19
      %p190 = scmp.lt.s32.totalorder %s19, 5
      %p191 = pnand %p189, %p190
      %p192 = pneg %p191
      // Predicated region
      $region9: #{tpu_custom_call.1} parent=5 // pred_check
        _
      $region10: #{tpu_custom_call.1} parent=5 // pred_check_branch
        %194 = sbr.rel (%p191) target = $region12
      $region11: #{tpu_custom_call.1} parent=5 // pred_region
        %s195 = ssub.s32 %s19, 1
        // Predicated region
        $region13: #{tpu_custom_call.1} parent=11 // pred_check
          %p196 = pneg %p40
        $region14: #{tpu_custom_call.1} parent=11 // pred_check_branch
          %198 = sbr.rel (%p196) target = $region16
        $region15: #{tpu_custom_call.1} parent=11 // pred_region
          _
        $region16: #{tpu_custom_call.1} parent=11 // pred_fallthru
          _
        // Predicated region
        $region17: #{tpu_custom_call.1} parent=11 // pred_check
          %p199 = pneg %p61
        $region18: #{tpu_custom_call.1} parent=11 // pred_check_branch
          %201 = sbr.rel (%p199) target = $region20
        $region19: #{tpu_custom_call.1} parent=11 // pred_region
          _
        $region20: #{tpu_custom_call.1} parent=11 // pred_fallthru
          _
        // Predicated region
        $region21: #{tpu_custom_call.1} parent=11 // pred_check
          %p202 = pneg %p82
        $region22: #{tpu_custom_call.1} parent=11 // pred_check_branch
          %204 = sbr.rel (%p202) target = $region24
        $region23: #{tpu_custom_call.1} parent=11 // pred_region
          _
        $region24: #{tpu_custom_call.1} parent=11 // pred_fallthru
          _
        // Predicated region
        $region25: #{tpu_custom_call.1} parent=11 // pred_check
          %p205 = pneg %p103
        $region26: #{tpu_custom_call.1} parent=11 // pred_check_branch
          %207 = sbr.rel (%p205) target = $region28
        $region27: #{tpu_custom_call.1} parent=11 // pred_region
          _
        $region28: #{tpu_custom_call.1} parent=11 // pred_fallthru
          _
      $region12: #{tpu_custom_call.1} parent=5 // pred_fallthru
        _
      %p208 = scmp.lt.s32.totalorder %s19, 4
      // Predicated region
      $region29: #{tpu_custom_call.1} parent=5 // pred_check
        %p209 = pneg %p208
      $region30: #{tpu_custom_call.1} parent=5 // pred_check_branch
        %211 = sbr.rel (%p209) target = $region32
      $region31: #{tpu_custom_call.1} parent=5 // pred_region
        // Predicated region
        $region33: #{tpu_custom_call.1} parent=31 // pred_check
          %p212 = pneg %p123
        $region34: #{tpu_custom_call.1} parent=31 // pred_check_branch
          %214 = sbr.rel (%p212) target = $region36
        $region35: #{tpu_custom_call.1} parent=31 // pred_region
          %s215 = sand.u32 %s113, 1
          %s216 = scalar_lea.sflag [#allocation3], %s215
          %s217 = sand.u32 %s113, 1
          %s218 = smul.addr %s217, 32
          %s219 = scalar_lea.vmem [#allocation2], %s218
          %s220 = smul.u32 2, %s19
          %s222 = ssub.s32 512, 512
          %223 = vsyncadd %s216, %s222
          %s224 = smul.addr %s220, 2
          %s225 = smul.addr %s224, 128
          %s226 = scalar_lea.hbm %s4, %s225
          %s227 = sshll.u32 %s219, 4
          %s228 = int_to_ptr.vmem [resolvable:$true] %s227
          %233 = dma.hbm_to_vmem [thread:$0]  %s226, 512, %s228, %s216, 128, 128, 8
        $region36: #{tpu_custom_call.1} parent=31 // pred_fallthru
          _
      $region32: #{tpu_custom_call.1} parent=5 // pred_fallthru
        _
      %p234 = scmp.le.s32.totalorder 1, %s19
      %p235 = scmp.lt.s32.totalorder %s19, 5
      %p236 = pnand %p234, %p235
      %p237 = pneg %p236
      // Predicated region
      $region37: #{tpu_custom_call.1} parent=5 // pred_check
        _
      $region38: #{tpu_custom_call.1} parent=5 // pred_check_branch
        %239 = sbr.rel (%p236) target = $region40
      $region39: #{tpu_custom_call.1} parent=5 // pred_region
        %s240 = ssub.s32 %s19, 1
        %s241 = sand.u32 %s116, 1
        %s242 = scalar_lea.sflag [#allocation3], %s241
        %s243 = sand.u32 %s116, 1
        %s244 = smul.addr %s243, 32
        %s245 = scalar_lea.vmem [#allocation2], %s244
        // Predicated region
        $region41: #{tpu_custom_call.1} parent=39 // pred_check
          %p246 = pneg %p129
        $region42: #{tpu_custom_call.1} parent=39 // pred_check_branch
          %248 = sbr.rel (%p246) target = $region44
        $region43: #{tpu_custom_call.1} parent=39 // pred_region
          %249 = dma.done %s242, 512
        $region44: #{tpu_custom_call.1} parent=39 // pred_fallthru
          _
        %p250 = pneg %p40
        %p251 = pneg %p37
        %p252 = pneg %p61
        %p253 = pneg %p58
        %p254 = pneg %p82
        %p255 = pneg %p79
        %p256 = pneg %p103
        %p257 = pneg %p100
        %s258 = sand.u32 %s116, 1
        %s259 = scalar_lea.sflag [#allocation3], %s258
        %s260 = sand.u32 %s116, 1
        %s261 = smul.addr %s260, 32
        %s262 = scalar_lea.vmem [#allocation2], %s261
        %p263 = pneg %p129
        %p264 = pneg %p126
        %p265 = pneg %p155
        %p266 = pneg %p152
        %s267 = sand.u32 %s142, 1
        %s268 = scalar_lea.sflag [#allocation4], %s267
        %s269 = sand.u32 %s142, 1
        %s270 = smul.addr %s269, 16
        %s271 = scalar_lea.vmem [#allocation5], %s270
        %p272 = pneg %p181
        %p273 = pneg %p178
        %s274 = smul.u32 2, %s24
        %p275 = scmp.lt.s32.totalorder %s274, 7
        %s276 = scalar_select %p275, %s274, 7
        %s277 = smul.addr %s276, 4
        %s278 = scalar_lea.vmem %s6, %s277
        %s279 = smul.u32 2, %s24
        %s280 = smul.u32 2, %s24
        %s281 = smul.u32 2, %s24
        %p282 = scmp.lt.s32.totalorder %s281, 7
        %s283 = scalar_select %p282, %s281, 7
        %s284 = smul.addr %s283, 4
        %s285 = scalar_lea.vmem %s6, %s284
        %s286 = smul.u32 2, %s24
        %v288 = vld [vmem:[%s245] sm:$0xff]
        %v289 = vld [vmem:[%s245 + $0x8] sm:$0xff]
        %v290 = vld [vmem:[%s245 + $0x10] sm:$0xff]
        %v291 = vld [vmem:[%s245 + $0x18] sm:$0xff]
        %v292 = vpack.c.bf16 %v289, %v288
        %v293 = vpack.c.bf16 %v291, %v290
        %v294 = vld [vmem:[%s0] sm:$0xf]
        %v295 = vld [vmem:[%s1] sm:$0xf]
        %v296 = vld [vmem:[%s1 + $0x4] sm:$0xf]
        %vm297 = vcmask 130048
        %v299 = vsel %vm297, %v294, 0
        %301 = vmatprep.subr.bf16.mxu0 0
        %302 = vmatpush1.bf16.msra.mxu0 %v292
        %303 = vmatprep.subr.bf16.mxu0 0
        %304 = vmatpush1.bf16.msra.mxu0 0
        %305 = vmatprep.subr.bf16.mxu0 0
        %306 = vmatpush1.bf16.msra.mxu0 0
        %307 = vmatprep.subr.bf16.mxu0 0
        %308 = vmatpush1.bf16.msra.mxu0 0
        %309 = vmatprep.subr.bf16.mxu0 0
        %310 = vmatpush1.bf16.msra.mxu0 0
        %311 = vmatprep.subr.bf16.mxu0 0
        %312 = vmatpush1.bf16.msra.mxu0 0
        %313 = vmatprep.subr.bf16.mxu0 0
        %314 = vmatpush1.bf16.msra.mxu0 0
        %315 = vmatprep.subr.bf16.mxu0 0
        %316 = vmatpush1.bf16.msra.mxu0 0
        %317 = vmatprep.subr.bf16.mxu0 0
        %318 = vmatpush1.bf16.msra.mxu0 0
        %319 = vmatprep.subr.bf16.mxu0 0
        %320 = vmatpush1.bf16.msra.mxu0 0
        %321 = vmatprep.subr.bf16.mxu0 0
        %322 = vmatpush1.bf16.msra.mxu0 0
        %323 = vmatprep.subr.bf16.mxu0 0
        %324 = vmatpush1.bf16.msra.mxu0 0
        %325 = vmatprep.subr.bf16.mxu0 0
        %326 = vmatpush1.bf16.msra.mxu0 0
        %327 = vmatprep.subr.bf16.mxu0 0
        %328 = vmatpush1.bf16.msra.mxu0 0
        %329 = vmatprep.subr.bf16.mxu0 0
        %330 = vmatpush1.bf16.msra.mxu0 0
        %331 = vmatprep.subr.bf16.mxu0 0
        %332 = vmatpush1.bf16.msra.mxu0 0
        %333 = vmatprep.mubr.bf16.mxu0 0
        %334 = vmatmul.mubr.bf16.gmra.mrb[0].mxu0 %v299
        %v335 = vpop.f32.mrb[0].mxu0
        %v336 = vadd.f32 0.0, %v335
        %v337 = vpop.f32.mrb[0].mxu0
        %v338 = vpop.f32.mrb[0].mxu0
        %v339 = vpop.f32.mrb[0].mxu0
        %340 = vdwg.mxu0
        %341 = vmatprep.subr.bf16.mxu0 0
        %342 = vmatpush1.bf16.msra.mxu0 %v293
        %343 = vmatprep.subr.bf16.mxu0 0
        %344 = vmatpush1.bf16.msra.mxu0 0
        %345 = vmatprep.subr.bf16.mxu0 0
        %346 = vmatpush1.bf16.msra.mxu0 0
        %347 = vmatprep.subr.bf16.mxu0 0
        %348 = vmatpush1.bf16.msra.mxu0 0
        %349 = vmatprep.subr.bf16.mxu0 0
        %350 = vmatpush1.bf16.msra.mxu0 0
        %351 = vmatprep.subr.bf16.mxu0 0
        %352 = vmatpush1.bf16.msra.mxu0 0
        %353 = vmatprep.subr.bf16.mxu0 0
        %354 = vmatpush1.bf16.msra.mxu0 0
        %355 = vmatprep.subr.bf16.mxu0 0
        %356 = vmatpush1.bf16.msra.mxu0 0
        %357 = vmatprep.subr.bf16.mxu0 0
        %358 = vmatpush1.bf16.msra.mxu0 0
        %359 = vmatprep.subr.bf16.mxu0 0
        %360 = vmatpush1.bf16.msra.mxu0 0
        %361 = vmatprep.subr.bf16.mxu0 0
        %362 = vmatpush1.bf16.msra.mxu0 0
        %363 = vmatprep.subr.bf16.mxu0 0
        %364 = vmatpush1.bf16.msra.mxu0 0
        %365 = vmatprep.subr.bf16.mxu0 0
        %366 = vmatpush1.bf16.msra.mxu0 0
        %367 = vmatprep.subr.bf16.mxu0 0
        %368 = vmatpush1.bf16.msra.mxu0 0
        %369 = vmatprep.subr.bf16.mxu0 0
        %370 = vmatpush1.bf16.msra.mxu0 0
        %371 = vmatprep.subr.bf16.mxu0 0
        %372 = vmatpush1.bf16.msra.mxu0 0
        %373 = vmatprep.mubr.bf16.mxu0 0
        %374 = vmatmul.mubr.bf16.gmra.mrb[0].mxu0 %v299
        %v375 = vpop.f32.mrb[0].mxu0
        %v376 = vadd.f32 0.0, %v375
        %v377 = vpop.f32.mrb[0].mxu0
        %v378 = vpop.f32.mrb[0].mxu0
        %v379 = vpop.f32.mrb[0].mxu0
        %380 = vdwg.mxu0
        %v381 = vpack.c.bf16 %v376, %v336
        %v384 = vunpack.c.l.b16 %v295
        %v385 = vunpack.c.l.b16 %v296
        %v386 = vpack.c.b16 %v385, %v384
        %v389 = vsel %vm297, %v381, 0
        %391 = vmatprep.subr.bf16.mxu0 0
        %392 = vmatpush1.bf16.msra.mxu0 %v386
        %393 = vmatprep.subr.bf16.mxu0 0
        %394 = vmatpush1.bf16.msra.mxu0 0
        %395 = vmatprep.subr.bf16.mxu0 0
        %396 = vmatpush1.bf16.msra.mxu0 0
        %397 = vmatprep.subr.bf16.mxu0 0
        %398 = vmatpush1.bf16.msra.mxu0 0
        %399 = vmatprep.subr.bf16.mxu0 0
        %400 = vmatpush1.bf16.msra.mxu0 0
        %401 = vmatprep.subr.bf16.mxu0 0
        %402 = vmatpush1.bf16.msra.mxu0 0
        %403 = vmatprep.subr.bf16.mxu0 0
        %404 = vmatpush1.bf16.msra.mxu0 0
        %405 = vmatprep.subr.bf16.mxu0 0
        %406 = vmatpush1.bf16.msra.mxu0 0
        %407 = vmatprep.subr.bf16.mxu0 0
        %408 = vmatpush1.bf16.msra.mxu0 0
        %409 = vmatprep.subr.bf16.mxu0 0
        %410 = vmatpush1.bf16.msra.mxu0 0
        %411 = vmatprep.subr.bf16.mxu0 0
        %412 = vmatpush1.bf16.msra.mxu0 0
        %413 = vmatprep.subr.bf16.mxu0 0
        %414 = vmatpush1.bf16.msra.mxu0 0
        %415 = vmatprep.subr.bf16.mxu0 0
        %416 = vmatpush1.bf16.msra.mxu0 0
        %417 = vmatprep.subr.bf16.mxu0 0
        %418 = vmatpush1.bf16.msra.mxu0 0
        %419 = vmatprep.subr.bf16.mxu0 0
        %420 = vmatpush1.bf16.msra.mxu0 0
        %421 = vmatprep.subr.bf16.mxu0 0
        %422 = vmatpush1.bf16.msra.mxu0 0
        %423 = vmatprep.mubr.bf16.mxu0 0
        %424 = vmatmul.mubr.bf16.gmra.mrb[0].mxu0 %v389
        %v425 = vpop.f32.mrb[0].mxu0
        %v426 = vadd.f32 0.0, %v425
        %v427 = vpop.f32.mrb[0].mxu0
        %v428 = vpop.f32.mrb[0].mxu0
        %v429 = vadd.f32 0.0, %v428
        %v430 = vpop.f32.mrb[0].mxu0
        %431 = vdwg.mxu0
        %vm432 = vcmask 64512
        %433 = vst.msk [vmem:[%s271] sm:$0xff] %vm432, %v426
        %434 = vst.msk [vmem:[%s271 + $0x8] sm:$0xff] %vm432, %v429
        %v435 = vld [vmem:[%s2] sm:$0x3]
        %v436 = vld [vmem:[%s3] sm:$0xf]
        %v437 = vld [vmem:[%s3 + $0x4] sm:$0xf]
        %v439 = vsel %vm297, %v435, 0
        %441 = vmatprep.subr.bf16.mxu0 0
        %442 = vmatpush1.bf16.msra.mxu0 %v292
        %443 = vmatprep.subr.bf16.mxu0 0
        %444 = vmatpush1.bf16.msra.mxu0 0
        %445 = vmatprep.subr.bf16.mxu0 0
        %446 = vmatpush1.bf16.msra.mxu0 0
        %447 = vmatprep.subr.bf16.mxu0 0
        %448 = vmatpush1.bf16.msra.mxu0 0
        %449 = vmatprep.subr.bf16.mxu0 0
        %450 = vmatpush1.bf16.msra.mxu0 0
        %451 = vmatprep.subr.bf16.mxu0 0
        %452 = vmatpush1.bf16.msra.mxu0 0
        %453 = vmatprep.subr.bf16.mxu0 0
        %454 = vmatpush1.bf16.msra.mxu0 0
        %455 = vmatprep.subr.bf16.mxu0 0
        %456 = vmatpush1.bf16.msra.mxu0 0
        %457 = vmatprep.subr.bf16.mxu0 0
        %458 = vmatpush1.bf16.msra.mxu0 0
        %459 = vmatprep.subr.bf16.mxu0 0
        %460 = vmatpush1.bf16.msra.mxu0 0
        %461 = vmatprep.subr.bf16.mxu0 0
        %462 = vmatpush1.bf16.msra.mxu0 0
        %463 = vmatprep.subr.bf16.mxu0 0
        %464 = vmatpush1.bf16.msra.mxu0 0
        %465 = vmatprep.subr.bf16.mxu0 0
        %466 = vmatpush1.bf16.msra.mxu0 0
        %467 = vmatprep.subr.bf16.mxu0 0
        %468 = vmatpush1.bf16.msra.mxu0 0
        %469 = vmatprep.subr.bf16.mxu0 0
        %470 = vmatpush1.bf16.msra.mxu0 0
        %471 = vmatprep.subr.bf16.mxu0 0
        %472 = vmatpush1.bf16.msra.mxu0 0
        %473 = vmatprep.mubr.bf16.mxu0 0
        %474 = vmatmul.mubr.bf16.gmra.mrb[0].mxu0 %v439
        %v475 = vpop.f32.mrb[0].mxu0
        %v476 = vadd.f32 0.0, %v475
        %v477 = vpop.f32.mrb[0].mxu0
        %v478 = vpop.f32.mrb[0].mxu0
        %v479 = vpop.f32.mrb[0].mxu0
        %480 = vdwg.mxu0
        %481 = vmatprep.subr.bf16.mxu0 0
        %482 = vmatpush1.bf16.msra.mxu0 %v293
        %483 = vmatprep.subr.bf16.mxu0 0
        %484 = vmatpush1.bf16.msra.mxu0 0
        %485 = vmatprep.subr.bf16.mxu0 0
        %486 = vmatpush1.bf16.msra.mxu0 0
        %487 = vmatprep.subr.bf16.mxu0 0
        %488 = vmatpush1.bf16.msra.mxu0 0
        %489 = vmatprep.subr.bf16.mxu0 0
        %490 = vmatpush1.bf16.msra.mxu0 0
        %491 = vmatprep.subr.bf16.mxu0 0
        %492 = vmatpush1.bf16.msra.mxu0 0
        %493 = vmatprep.subr.bf16.mxu0 0
        %494 = vmatpush1.bf16.msra.mxu0 0
        %495 = vmatprep.subr.bf16.mxu0 0
        %496 = vmatpush1.bf16.msra.mxu0 0
        %497 = vmatprep.subr.bf16.mxu0 0
        %498 = vmatpush1.bf16.msra.mxu0 0
        %499 = vmatprep.subr.bf16.mxu0 0
        %500 = vmatpush1.bf16.msra.mxu0 0
        %501 = vmatprep.subr.bf16.mxu0 0
        %502 = vmatpush1.bf16.msra.mxu0 0
        %503 = vmatprep.subr.bf16.mxu0 0
        %504 = vmatpush1.bf16.msra.mxu0 0
        %505 = vmatprep.subr.bf16.mxu0 0
        %506 = vmatpush1.bf16.msra.mxu0 0
        %507 = vmatprep.subr.bf16.mxu0 0
        %508 = vmatpush1.bf16.msra.mxu0 0
        %509 = vmatprep.subr.bf16.mxu0 0
        %510 = vmatpush1.bf16.msra.mxu0 0
        %511 = vmatprep.subr.bf16.mxu0 0
        %512 = vmatpush1.bf16.msra.mxu0 0
        %513 = vmatprep.mubr.bf16.mxu0 0
        %514 = vmatmul.mubr.bf16.gmra.mrb[0].mxu0 %v439
        %v515 = vpop.f32.mrb[0].mxu0
        %v516 = vadd.f32 0.0, %v515
        %v517 = vpop.f32.mrb[0].mxu0
        %v518 = vpop.f32.mrb[0].mxu0
        %v519 = vpop.f32.mrb[0].mxu0
        %520 = vdwg.mxu0
        %v523 = vcombine.low %v476, %v516
        %v525 = vpack.c.bf16 %v523, %v523
        %v528 = vunpack.c.l.b16 %v436
        %v529 = vunpack.c.l.b16 %v437
        %v530 = vpack.c.b16 %v529, %v528
        %v533 = vsel %vm297, %v525, 0
        %535 = vmatprep.subr.bf16.mxu0 0
        %536 = vmatpush1.bf16.msra.mxu0 %v530
        %537 = vmatprep.subr.bf16.mxu0 0
        %538 = vmatpush1.bf16.msra.mxu0 0
        %539 = vmatprep.subr.bf16.mxu0 0
        %540 = vmatpush1.bf16.msra.mxu0 0
        %541 = vmatprep.subr.bf16.mxu0 0
        %542 = vmatpush1.bf16.msra.mxu0 0
        %543 = vmatprep.subr.bf16.mxu0 0
        %544 = vmatpush1.bf16.msra.mxu0 0
        %545 = vmatprep.subr.bf16.mxu0 0
        %546 = vmatpush1.bf16.msra.mxu0 0
        %547 = vmatprep.subr.bf16.mxu0 0
        %548 = vmatpush1.bf16.msra.mxu0 0
        %549 = vmatprep.subr.bf16.mxu0 0
        %550 = vmatpush1.bf16.msra.mxu0 0
        %551 = vmatprep.subr.bf16.mxu0 0
        %552 = vmatpush1.bf16.msra.mxu0 0
        %553 = vmatprep.subr.bf16.mxu0 0
        %554 = vmatpush1.bf16.msra.mxu0 0
        %555 = vmatprep.subr.bf16.mxu0 0
        %556 = vmatpush1.bf16.msra.mxu0 0
        %557 = vmatprep.subr.bf16.mxu0 0
        %558 = vmatpush1.bf16.msra.mxu0 0
        %559 = vmatprep.subr.bf16.mxu0 0
        %560 = vmatpush1.bf16.msra.mxu0 0
        %561 = vmatprep.subr.bf16.mxu0 0
        %562 = vmatpush1.bf16.msra.mxu0 0
        %563 = vmatprep.subr.bf16.mxu0 0
        %564 = vmatpush1.bf16.msra.mxu0 0
        %565 = vmatprep.subr.bf16.mxu0 0
        %566 = vmatpush1.bf16.msra.mxu0 0
        %567 = vmatprep.mubr.bf16.mxu0 0
        %568 = vmatmul.mubr.bf16.gmra.mrb[0].mxu0 %v533
        %v569 = vpop.f32.mrb[0].mxu0
        %v570 = vadd.f32 0.0, %v569
        %v571 = vpop.f32.mrb[0].mxu0
        %v572 = vpop.f32.mrb[0].mxu0
        %v573 = vpop.f32.mrb[0].mxu0
        %574 = vdwg.mxu0
        %v576 = vcombine.high %v570, %v570
        %vm578 = vcmask 27648
        %579 = vst.msk [vmem:[%s285] sm:$0xf] %vm578, %v570
        %580 = vst.msk [vmem:[%s285 + $0x4] sm:$0xf] %vm578, %v576
        %s581 = sand.u32 %s142, 1
        %s582 = scalar_lea.sflag [#allocation4], %s581
        %s583 = sand.u32 %s142, 1
        %s584 = smul.addr %s583, 16
        %s585 = scalar_lea.vmem [#allocation5], %s584
        %s586 = smul.u32 2, %s24
        %p587 = scmp.lt.s32.totalorder %s586, 7
        %s588 = scalar_select %p587, %s586, 7
        %s589 = smul.addr %s588, 4
        %s590 = scalar_lea.vmem %s6, %s589
        // Predicated region
        $region45: #{tpu_custom_call.1} parent=39 // pred_check
          %p591 = pneg %p152
        $region46: #{tpu_custom_call.1} parent=39 // pred_check_branch
          %593 = sbr.rel (%p591) target = $region48
        $region47: #{tpu_custom_call.1} parent=39 // pred_region
          %s594 = smul.u32 2, %s24
          %s596 = ssub.s32 256, 256
          %597 = vsyncadd %s582, %s596
          %s598 = smul.addr %s594, 128
          %s599 = scalar_lea.hbm %s5, %s598
          %s600 = sshll.u32 %s585, 4
          %s601 = int_to_ptr.vmem [resolvable:$true] %s600
          %606 = dma.vmem_to_hbm [thread:$0]  %s601, 256, %s599, %s582, 128, 128, 8
        $region48: #{tpu_custom_call.1} parent=39 // pred_fallthru
          _
        // Predicated region
        $region49: #{tpu_custom_call.1} parent=39 // pred_check
          %p607 = pneg %p178
        $region50: #{tpu_custom_call.1} parent=39 // pred_check_branch
          %609 = sbr.rel (%p607) target = $region52
        $region51: #{tpu_custom_call.1} parent=39 // pred_region
          %s610 = smul.u32 2, %s24
        $region52: #{tpu_custom_call.1} parent=39 // pred_fallthru
          _
      $region40: #{tpu_custom_call.1} parent=5 // pred_fallthru
        _
      %p611 = scmp.le.s32.totalorder 2, %s19
      // Predicated region
      $region53: #{tpu_custom_call.1} parent=5 // pred_check
        %p612 = pneg %p611
      $region54: #{tpu_custom_call.1} parent=5 // pred_check_branch
        %614 = sbr.rel (%p612) target = $region56
      $region55: #{tpu_custom_call.1} parent=5 // pred_region
        %s615 = ssub.s32 %s19, 2
        // Predicated region
        $region57: #{tpu_custom_call.1} parent=55 // pred_check
          %p616 = pneg %p158
        $region58: #{tpu_custom_call.1} parent=55 // pred_check_branch
          %618 = sbr.rel (%p616) target = $region60
        $region59: #{tpu_custom_call.1} parent=55 // pred_region
          %s619 = sand.u32 %s143, 1
          %s620 = scalar_lea.sflag [#allocation4], %s619
          %s621 = sand.u32 %s143, 1
          %s622 = smul.addr %s621, 16
          %s623 = scalar_lea.vmem [#allocation5], %s622
          %624 = dma.done %s620, 256
        $region60: #{tpu_custom_call.1} parent=55 // pred_fallthru
          _
        // Predicated region
        $region61: #{tpu_custom_call.1} parent=55 // pred_check
          %p625 = pneg %p184
        $region62: #{tpu_custom_call.1} parent=55 // pred_check_branch
          %627 = sbr.rel (%p625) target = $region64
        $region63: #{tpu_custom_call.1} parent=55 // pred_region
          %s628 = smul.u32 2, %s25
          %p629 = scmp.lt.s32.totalorder %s628, 7
          %s630 = scalar_select %p629, %s628, 7
          %s631 = smul.addr %s630, 4
          %s632 = scalar_lea.vmem %s6, %s631
        $region64: #{tpu_custom_call.1} parent=55 // pred_fallthru
          _
      $region56: #{tpu_custom_call.1} parent=5 // pred_fallthru
        _
    $region6: #{tpu_custom_call.1} parent=1 // loop_footer
      %s23 = sadd.s32 1, %s19
    $region7: #{tpu_custom_call.1} parent=1 // loop_footer_branch
      %18 = sbr.rel target = $region3
    $region8: #{tpu_custom_call.1} parent=1 // loop_exit
      _
    %633 = vsyncpa [#allocation3], 1
    %s634 = scalar_lea.sflag [#allocation3], 1
    %635 = vsyncpa %s634, 1
    %636 = vsyncpa [#allocation4], 1
    %s637 = scalar_lea.sflag [#allocation4], 1
    %638 = vsyncpa %s637, 1

</llo_original>
